<compile_context>
chip_gen: v5e
topology: v5e:2x2
jax: 0.10.0
libtpu: 0.0.40
codegen_flags: <defaults>
</compile_context>

<pallas_src>
import functools

import jax
import jax.numpy as jnp
from jax.experimental import pallas as pl
from jax.experimental.pallas import tpu as pltpu

IN_FEATURES = 12
HIDDEN = 128
OUT_FEATURES = 1


def _round_up(n, m):
    return ((n + m - 1) // m) * m


def classifier_kernel(xT_ref, w1_ref, b1_ref, w2_ref, b2_ref, o_ref, *, chunk):
    # xT: (24, THB)  bf16  -- two batch half-tiles stacked along K (sublanes)
    # w1: (256, 24)  bf16  -- blockdiag(fc1.weight, fc1.weight)
    # b1: (256, 1)   f32   -- fc1.bias tiled twice
    # w2: (128, 1)   f32   -- fc2.weight as a column
    # b2: (1, 1)     f32
    # o : (2, THB)   f32   -- row 0: first batch half, row 1: second half
    n_chunks = xT_ref.shape[1] // chunk

    @pl.loop(0, n_chunks)
    def _(c):
        start = pl.multiple_of(c * chunk, chunk)
        sl = pl.ds(start, chunk)
        # fc1 on the MXU: (256, 24) @ (24, chunk) -> (256, chunk), f32 acc.
        h = jnp.dot(w1_ref[...], xT_ref[:, sl],
                    preferred_element_type=jnp.float32)
        h = jnp.maximum(h + b1_ref[...], 0.0)
        # fc2 (N=1): VPU multiply + sublane reduce, one per stacked half.
        # Do NOT sum across the two 128-row sub-problems.
        w2 = w2_ref[...]
        b2 = b2_ref[...]
        y0 = jnp.sum(h[0:HIDDEN, :] * w2, axis=0, keepdims=True)
        y1 = jnp.sum(h[HIDDEN:2 * HIDDEN, :] * w2, axis=0, keepdims=True)
        o_ref[0:1, sl] = jax.nn.sigmoid(y0 + b2).astype(o_ref.dtype)
        o_ref[1:2, sl] = jax.nn.sigmoid(y1 + b2).astype(o_ref.dtype)


def classifier_forward(x, w1, b1, w2, b2, *, tb_half=32768, lane_chunk=2048):
    """x: (B, 12) float32 -> (B, 1) float32.

    Params are in PyTorch nn.Linear convention:
      w1: (128, 12), b1: (128,), w2: (1, 128), b2: (1,)
    `tb_half`  : max half-batch lane tile per grid step (multiple of lane_chunk)
    `lane_chunk`: in-kernel chunk over the lane axis (multiple of 128)
    """
    B = x.shape[0]
    half_needed = _round_up(max(-(-B // 2), 1), 128)

    # Half-batch lane tile per grid step.  If everything fits one tile but is
    # large enough, split in two so the "parallel" grid axis can shard across
    # both TensorCores on v7x.
    if 2 * lane_chunk <= half_needed <= tb_half:
        thb = _round_up(-(-half_needed // 2), lane_chunk)
    else:
        thb = min(tb_half, half_needed)
    chunk = min(lane_chunk, thb)
    thb = _round_up(thb, chunk)
    b_half_pad = _round_up(half_needed, thb)
    num_tiles = b_half_pad // thb
    b_pad = 2 * b_half_pad

    # Layout plumbing (single XLA pass): pad, transpose, cast, and stack the
    # two batch halves along the contraction axis.
    x_pad = jnp.pad(x, ((0, b_pad - B), (0, 0)))
    xT = x_pad.T.astype(jnp.bfloat16)                                  # (12, b_pad)
    xT2 = jnp.concatenate(
        [xT[:, :b_half_pad], xT[:, b_half_pad:]], axis=0)              # (24, b_half_pad)

    w1_bf = w1.astype(jnp.bfloat16)                                    # (128, 12)
    zero = jnp.zeros_like(w1_bf)
    w1_bd = jnp.concatenate(
        [jnp.concatenate([w1_bf, zero], axis=1),
         jnp.concatenate([zero, w1_bf], axis=1)], axis=0)              # (256, 24)
    b1_c = jnp.tile(b1.reshape(HIDDEN, 1), (2, 1)).astype(jnp.float32)  # (256, 1)
    w2_c = w2.reshape(OUT_FEATURES, HIDDEN).T.astype(jnp.float32)       # (128, 1)
    b2_c = b2.reshape(1, 1).astype(jnp.float32)                         # (1, 1)

    out2 = pl.pallas_call(
        functools.partial(classifier_kernel, chunk=chunk),
        out_shape=jax.ShapeDtypeStruct((2, b_half_pad), jnp.float32),
        grid_spec=pl.GridSpec(
            grid=(num_tiles,),
            in_specs=[
                # x tiles march along the half-batch (lane) axis.
                pl.BlockSpec((2 * IN_FEATURES, thb), lambda i: (0, i)),
                # Weights / biases: grid-invariant, DMA'd once, stay resident.
                pl.BlockSpec((2 * HIDDEN, 2 * IN_FEATURES), lambda i: (0, 0)),
                pl.BlockSpec((2 * HIDDEN, 1), lambda i: (0, 0)),
                pl.BlockSpec((HIDDEN, 1), lambda i: (0, 0)),
                pl.BlockSpec((1, 1), lambda i: (0, 0)),
            ],
            out_specs=pl.BlockSpec((2, thb), lambda i: (0, i)),
        ),
        compiler_params=pltpu.CompilerParams(
            dimension_semantics=("parallel",),
            vmem_limit_bytes=32 * 1024 * 1024,
        ),
    )(xT2, w1_bd, b1_c, w2_c, b2_c)

    # (2, b_half_pad) row-major flatten restores original batch order; padded
    # columns (garbage from zero inputs) are sliced off here.
    return out2.reshape(-1)[:B].reshape(B, OUT_FEATURES)


def init_params(key):
    """Deterministic init matching nn.Linear shapes (PyTorch convention)."""
    k1, k2, k3, k4 = jax.random.split(key, 4)
    lim1 = 1.0 / jnp.sqrt(IN_FEATURES)
    lim2 = 1.0 / jnp.sqrt(HIDDEN)
    w1 = jax.random.uniform(k1, (HIDDEN, IN_FEATURES), jnp.float32, -lim1, lim1)
    b1 = jax.random.uniform(k2, (HIDDEN,), jnp.float32, -lim1, lim1)
    w2 = jax.random.uniform(k3, (OUT_FEATURES, HIDDEN), jnp.float32, -lim2, lim2)
    b2 = jax.random.uniform(k4, (OUT_FEATURES,), jnp.float32, -lim2, lim2)
    return w1, b1, w2, b2


def reference_forward(x, w1, b1, w2, b2):
    h = jnp.maximum(x @ w1.T + b1, 0.0)
    return jax.nn.sigmoid(h @ w2.T + b2)


if __name__ == "__main__":
    key = jax.random.PRNGKey(0)
    kx, kp = jax.random.split(key)
    w1, b1, w2, b2 = init_params(kp)

    # Primary small check (batch=8) at default tiling.
    x_small = jax.random.normal(kx, (8, IN_FEATURES), jnp.float32)
    out = jax.block_until_ready(classifier_forward(x_small, w1, b1, w2, b2))
    ref = reference_forward(x_small, w1, b1, w2, b2)
    assert out.shape == (8, OUT_FEATURES)
    # bf16 x / W1 streaming -> ~1e-2 tolerance on the sigmoid output.
    assert jnp.allclose(out, ref, atol=1e-2, rtol=1e-2), "mismatch (batch=8)"

    # Secondary check exercising the multi-tile grid, the in-kernel lane-chunk
    # loop and batch padding, with tiny tiles so it stays fast.
    x_big = jax.random.normal(kx, (601, IN_FEATURES), jnp.float32)
    out_b = jax.block_until_ready(
        classifier_forward(x_big, w1, b1, w2, b2, tb_half=256, lane_chunk=128))
    ref_b = reference_forward(x_big, w1, b1, w2, b2)
    assert out_b.shape == (601, OUT_FEATURES)
    assert jnp.allclose(out_b, ref_b, atol=1e-2, rtol=1e-2), "mismatch (batch=601)"

    print("KERNEL_OK")
</pallas_src>

<mosaic_0001>
module attributes {stable_mosaic.version = 11 : i64} {
  func.func @classifier_kernel(%arg0: i32, %arg1: memref<24x128xbf16, #tpu.memory_space<vmem>>, %arg2: memref<256x24xbf16, #tpu.memory_space<vmem>>, %arg3: memref<256x1xf32, #tpu.memory_space<vmem>>, %arg4: memref<128x1xf32, #tpu.memory_space<vmem>>, %arg5: memref<1x1xf32, #tpu.memory_space<vmem>>, %arg6: memref<2x128xf32, #tpu.memory_space<vmem>>) attributes {dimension_semantics = [#tpu.dimension_semantics<parallel>], iteration_bounds = array<i64: 1>, scalar_prefetch = 0 : i64, scratch_operands = 0 : i64, tpu.core_type = #tpu.core_type<tc>, window_params = [{transform_indices = @transform_0, window_bounds = array<i64: 24, 128>}, {pipeline_mode = #tpu.pipeline_mode<synchronous>, transform_indices = @transform_1, window_bounds = array<i64: 256, 24>}, {pipeline_mode = #tpu.pipeline_mode<synchronous>, transform_indices = @transform_2, window_bounds = array<i64: 256, 1>}, {pipeline_mode = #tpu.pipeline_mode<synchronous>, transform_indices = @transform_3, window_bounds = array<i64: 128, 1>}, {pipeline_mode = #tpu.pipeline_mode<synchronous>, transform_indices = @transform_4, window_bounds = array<i64: 1, 1>}, {transform_indices = @transform_5, window_bounds = array<i64: 2, 128>}]} {
    %c0_i32 = arith.constant 0 : i32
    %c1_i32 = arith.constant 1 : i32
    %0 = arith.muli %c0_i32, %c1_i32 : i32
    %c0_i32_0 = arith.constant 0 : i32
    %1 = arith.addi %c0_i32_0, %0 : i32
    %c128_i32 = arith.constant 128 : i32
    %2 = arith.muli %1, %c128_i32 : i32
    %3 = tpu.assume_multiple %2, 128 : i32
    %c0 = arith.constant 0 : index
    %c0_1 = arith.constant 0 : index
    %4 = vector.load %arg2[%c0, %c0_1] : memref<256x24xbf16, #tpu.memory_space<vmem>>, vector<256x24xbf16>
    %c0_2 = arith.constant 0 : index
    %5 = arith.index_cast %3 : i32 to index
    %6 = vector.load %arg1[%c0_2, %5] : memref<24x128xbf16, #tpu.memory_space<vmem>>, vector<24x128xbf16>
    %cst = arith.constant dense<0.000000e+00> : vector<256x128xf32>
    %7 = tpu.matmul %4, %6, %cst {dimension_numbers = #tpu.dot_dimension_numbers<[1], [0], [0], [1], [0, 0, 1, 1], [], []>} : vector<256x24xbf16>, vector<24x128xbf16>, vector<256x128xf32> -> vector<256x128xf32>
    %c0_3 = arith.constant 0 : index
    %c0_4 = arith.constant 0 : index
    %8 = vector.load %arg3[%c0_3, %c0_4] : memref<256x1xf32, #tpu.memory_space<vmem>>, vector<256x1xf32>
    %9 = vector.broadcast %8 : vector<256x1xf32> to vector<256x128xf32>
    %10 = arith.addf %7, %9 : vector<256x128xf32>
    %cst_5 = arith.constant 0.000000e+00 : f32
    %11 = vector.broadcast %cst_5 : f32 to vector<256x128xf32>
    %12 = arith.maximumf %10, %11 : vector<256x128xf32>
    %c0_6 = arith.constant 0 : index
    %c0_7 = arith.constant 0 : index
    %13 = vector.load %arg4[%c0_6, %c0_7] : memref<128x1xf32, #tpu.memory_space<vmem>>, vector<128x1xf32>
    %c0_8 = arith.constant 0 : index
    %c0_9 = arith.constant 0 : index
    %14 = vector.load %arg5[%c0_8, %c0_9] : memref<1x1xf32, #tpu.memory_space<vmem>>, vector<1x1xf32>
    %15 = vector.extract_strided_slice %12 {offsets = [0, 0], sizes = [128, 128], strides = [1, 1]} : vector<256x128xf32> to vector<128x128xf32>
    %16 = vector.broadcast %13 : vector<128x1xf32> to vector<128x128xf32>
    %17 = arith.mulf %15, %16 : vector<128x128xf32>
    %cst_10 = arith.constant dense<0.000000e+00> : vector<128xf32>
    %18 = vector.multi_reduction <add>, %17, %cst_10 [0] : vector<128x128xf32> to vector<128xf32>
    %19 = vector.shape_cast %18 : vector<128xf32> to vector<1x128xf32>
    %20 = vector.extract_strided_slice %12 {offsets = [128, 0], sizes = [128, 128], strides = [1, 1]} : vector<256x128xf32> to vector<128x128xf32>
    %21 = vector.broadcast %13 : vector<128x1xf32> to vector<128x128xf32>
    %22 = arith.mulf %20, %21 : vector<128x128xf32>
    %cst_11 = arith.constant dense<0.000000e+00> : vector<128xf32>
    %23 = vector.multi_reduction <add>, %22, %cst_11 [0] : vector<128x128xf32> to vector<128xf32>
    %24 = vector.shape_cast %23 : vector<128xf32> to vector<1x128xf32>
    %25 = vector.broadcast %14 : vector<1x1xf32> to vector<1x128xf32>
    %26 = arith.addf %19, %25 : vector<1x128xf32>
    %27 = arith.negf %26 : vector<1x128xf32>
    %28 = math.exp %27 : vector<1x128xf32>
    %cst_12 = arith.constant 1.000000e+00 : f32
    %29 = vector.broadcast %cst_12 : f32 to vector<1x128xf32>
    %30 = arith.addf %29, %28 : vector<1x128xf32>
    %31 = arith.divf %29, %30 : vector<1x128xf32>
    %c0_13 = arith.constant 0 : index
    %32 = arith.index_cast %3 : i32 to index
    %33 = vector.load %arg6[%c0_13, %32] : memref<2x128xf32, #tpu.memory_space<vmem>>, vector<1x128xf32>
    tpu.vector_store %arg6[%c0_13, %32], %31 {strides = array<i32>} : memref<2x128xf32, #tpu.memory_space<vmem>>, vector<1x128xf32>,
    %34 = vector.broadcast %14 : vector<1x1xf32> to vector<1x128xf32>
    %35 = arith.addf %24, %34 : vector<1x128xf32>
    %36 = arith.negf %35 : vector<1x128xf32>
    %37 = math.exp %36 : vector<1x128xf32>
    %cst_14 = arith.constant 1.000000e+00 : f32
    %38 = vector.broadcast %cst_14 : f32 to vector<1x128xf32>
    %39 = arith.addf %38, %37 : vector<1x128xf32>
    %40 = arith.divf %38, %39 : vector<1x128xf32>
    %c1 = arith.constant 1 : index
    %41 = arith.index_cast %3 : i32 to index
    %42 = vector.load %arg6[%c1, %41] : memref<2x128xf32, #tpu.memory_space<vmem>>, vector<1x128xf32>
    tpu.vector_store %arg6[%c1, %41], %40 {strides = array<i32>} : memref<2x128xf32, #tpu.memory_space<vmem>>, vector<1x128xf32>,
    %c1_i32_15 = arith.constant 1 : i32
    return
  }
  func.func @transform_0(%arg0: i32) -> (i32, i32) {
    %c0_i32 = arith.constant 0 : i32
    %c0_i32_0 = arith.constant 0 : i32
    return %c0_i32, %arg0 : i32, i32
  }
  func.func @transform_1(%arg0: i32) -> (i32, i32) {
    %c0_i32 = arith.constant 0 : i32
    %c0_i32_0 = arith.constant 0 : i32
    %c0_i32_1 = arith.constant 0 : i32
    return %c0_i32, %c0_i32_0 : i32, i32
  }
  func.func @transform_2(%arg0: i32) -> (i32, i32) {
    %c0_i32 = arith.constant 0 : i32
    %c0_i32_0 = arith.constant 0 : i32
    %c0_i32_1 = arith.constant 0 : i32
    return %c0_i32, %c0_i32_0 : i32, i32
  }
  func.func @transform_3(%arg0: i32) -> (i32, i32) {
    %c0_i32 = arith.constant 0 : i32
    %c0_i32_0 = arith.constant 0 : i32
    %c0_i32_1 = arith.constant 0 : i32
    return %c0_i32, %c0_i32_0 : i32, i32
  }
  func.func @transform_4(%arg0: i32) -> (i32, i32) {
    %c0_i32 = arith.constant 0 : i32
    %c0_i32_0 = arith.constant 0 : i32
    %c0_i32_1 = arith.constant 0 : i32
    return %c0_i32, %c0_i32_0 : i32, i32
  }
  func.func @transform_5(%arg0: i32) -> (i32, i32) {
    %c0_i32 = arith.constant 0 : i32
    %c0_i32_0 = arith.constant 0 : i32
    return %c0_i32, %arg0 : i32, i32
  }
}

</mosaic_0001>

<llo_original>
// kernel: tpu_custom_call.1
$region0: #{tpu_custom_call.1}
  #allocation0 [shape = 'u32[]', space=smem, size = 0x4, offset = 0x4, fixed_abs, tag = 'smem constant byte address 0x4 - core index']
  #allocation1 [shape = 'u32[72,128]{1,0:T(1,128)}', space=vmem, size = 0x9000, scoped, tag = 'internal scratch']
  #allocation2 [shape = 'f32[1,1]{1,0:T(1,128)S(1)}', space=vmem, size = 0x200, scoped, tag = 'scoped memory for tpu_custom_call.1']
  %s0 = inlined_call_operand.vmem [shape: bf16[24,128], index: 0, kind: input, shape index: {}]
  %s1 = inlined_call_operand.vmem [shape: bf16[256,24], index: 1, kind: input, shape index: {}]
  %s2 = inlined_call_operand.vmem [shape: f32[256,1], index: 2, kind: input, shape index: {}]
  %s3 = inlined_call_operand.vmem [shape: f32[128,1], index: 3, kind: input, shape index: {}]
  %s4 = inlined_call_operand.<no memory space> [shape: f32[1,1], index: 4, kind: input, shape index: {}]
  %s5 = inlined_call_operand.hbm [shape: f32[2,128], index: 5, kind: output, shape index: {}]
  %s6 = sld [smem:[#allocation0]]
  $region30: #{tpu_custom_call.1} parent=0
    _
  %s8 = ssub.s32 1, %s6
  %s9 = scalar_select 0, %s8, %s6
  %v10 = vstv %s4
  %11 = vst [vmem:[#allocation2] sm:$0x1] %v10
  $region1: #{tpu_custom_call.1} parent=0
    #allocation3 [shape = 'u8[1024]{0}', space=vmem, size = 0x400, scoped, tag = 'output window, operand 0, single buffered']
    #allocation4 [shape = 's32[1]{0}', space=sflag, size = 0x4, scoped, tag = 'scoped memory for tpu_custom_call.1']
    %12 = vsyncpa [#allocation4], 0
    // Predicated region
    $region2: #{tpu_custom_call.1} parent=1 // pred_check
      _
    $region3: #{tpu_custom_call.1} parent=1 // pred_check_branch
      %14 = sbr.rel (0) target = $region5
    $region4: #{tpu_custom_call.1} parent=1 // pred_region
      _
    $region5: #{tpu_custom_call.1} parent=1 // pred_fallthru
      _
    // Predicated region
    $region6: #{tpu_custom_call.1} parent=1 // pred_check
      _
    $region7: #{tpu_custom_call.1} parent=1 // pred_check_branch
      %16 = sbr.rel (0) target = $region9
    $region8: #{tpu_custom_call.1} parent=1 // pred_region
      _
    $region9: #{tpu_custom_call.1} parent=1 // pred_fallthru
      _
    // Predicated region
    $region10: #{tpu_custom_call.1} parent=1 // pred_check
      _
    $region11: #{tpu_custom_call.1} parent=1 // pred_check_branch
      %18 = sbr.rel (0) target = $region13
    $region12: #{tpu_custom_call.1} parent=1 // pred_region
      _
    $region13: #{tpu_custom_call.1} parent=1 // pred_fallthru
      _
    // Predicated region
    $region14: #{tpu_custom_call.1} parent=1 // pred_check
      _
    $region15: #{tpu_custom_call.1} parent=1 // pred_check_branch
      %20 = sbr.rel (0) target = $region17
    $region16: #{tpu_custom_call.1} parent=1 // pred_region
      _
    $region17: #{tpu_custom_call.1} parent=1 // pred_fallthru
      _
    // Predicated region
    $region18: #{tpu_custom_call.1} parent=1 // pred_check
      _
    $region19: #{tpu_custom_call.1} parent=1 // pred_check_branch
      %22 = sbr.rel (0) target = $region21
    $region20: #{tpu_custom_call.1} parent=1 // pred_region
      _
    $region21: #{tpu_custom_call.1} parent=1 // pred_fallthru
      _
    %v24 = vld [vmem:[%s1] sm:$0xf]
    %v25 = vld [vmem:[%s1 + $0x4] sm:$0xf]
    %v26 = vld [vmem:[%s1 + $0x8] sm:$0xf]
    %v27 = vld [vmem:[%s1 + $0xc] sm:$0xf]
    %v28 = vld [vmem:[%s1 + $0x10] sm:$0xf]
    %v29 = vld [vmem:[%s1 + $0x14] sm:$0xf]
    %v30 = vld [vmem:[%s1 + $0x18] sm:$0xf]
    %v31 = vld [vmem:[%s1 + $0x1c] sm:$0xf]
    %v32 = vld [vmem:[%s1 + $0x20] sm:$0xf]
    %v33 = vld [vmem:[%s1 + $0x24] sm:$0xf]
    %v34 = vld [vmem:[%s1 + $0x28] sm:$0xf]
    %v35 = vld [vmem:[%s1 + $0x2c] sm:$0xf]
    %v36 = vld [vmem:[%s1 + $0x30] sm:$0xf]
    %v37 = vld [vmem:[%s1 + $0x34] sm:$0xf]
    %v38 = vld [vmem:[%s1 + $0x38] sm:$0xf]
    %v39 = vld [vmem:[%s1 + $0x3c] sm:$0xf]
    %v40 = vld [vmem:[%s1 + $0x40] sm:$0xf]
    %v41 = vld [vmem:[%s1 + $0x44] sm:$0xf]
    %v42 = vld [vmem:[%s1 + $0x48] sm:$0xf]
    %v43 = vld [vmem:[%s1 + $0x4c] sm:$0xf]
    %v44 = vld [vmem:[%s1 + $0x50] sm:$0xf]
    %v45 = vld [vmem:[%s1 + $0x54] sm:$0xf]
    %v46 = vld [vmem:[%s1 + $0x58] sm:$0xf]
    %v47 = vld [vmem:[%s1 + $0x5c] sm:$0xf]
    %v48 = vld [vmem:[%s1 + $0x60] sm:$0xf]
    %v49 = vld [vmem:[%s1 + $0x64] sm:$0xf]
    %v50 = vld [vmem:[%s1 + $0x68] sm:$0xf]
    %v51 = vld [vmem:[%s1 + $0x6c] sm:$0xf]
    %v52 = vld [vmem:[%s1 + $0x70] sm:$0xf]
    %v53 = vld [vmem:[%s1 + $0x74] sm:$0xf]
    %v54 = vld [vmem:[%s1 + $0x78] sm:$0xf]
    %v55 = vld [vmem:[%s1 + $0x7c] sm:$0xf]
    %v56 = vld [vmem:[%s0] sm:$0xf]
    %v57 = vld [vmem:[%s0 + $0x4] sm:$0xf]
    %v58 = vld [vmem:[%s0 + $0x8] sm:$0xf]
    %v59 = vld [vmem:[%s2] sm:$0xff]
    %v60 = vld [vmem:[%s2 + $0x8] sm:$0xff]
    %v61 = vld [vmem:[%s2 + $0x10] sm:$0xff]
    %v62 = vld [vmem:[%s2 + $0x18] sm:$0xff]
    %v63 = vld [vmem:[%s2 + $0x20] sm:$0xff]
    %v64 = vld [vmem:[%s2 + $0x28] sm:$0xff]
    %v65 = vld [vmem:[%s2 + $0x30] sm:$0xff]
    %v66 = vld [vmem:[%s2 + $0x38] sm:$0xff]
    %v67 = vld [vmem:[%s2 + $0x40] sm:$0xff]
    %v68 = vld [vmem:[%s2 + $0x48] sm:$0xff]
    %v69 = vld [vmem:[%s2 + $0x50] sm:$0xff]
    %v70 = vld [vmem:[%s2 + $0x58] sm:$0xff]
    %v71 = vld [vmem:[%s2 + $0x60] sm:$0xff]
    %v72 = vld [vmem:[%s2 + $0x68] sm:$0xff]
    %v73 = vld [vmem:[%s2 + $0x70] sm:$0xff]
    %v74 = vld [vmem:[%s2 + $0x78] sm:$0xff]
    %v75 = vld [vmem:[%s2 + $0x80] sm:$0xff]
    %v76 = vld [vmem:[%s2 + $0x88] sm:$0xff]
    %v77 = vld [vmem:[%s2 + $0x90] sm:$0xff]
    %v78 = vld [vmem:[%s2 + $0x98] sm:$0xff]
    %v79 = vld [vmem:[%s2 + $0xa0] sm:$0xff]
    %v80 = vld [vmem:[%s2 + $0xa8] sm:$0xff]
    %v81 = vld [vmem:[%s2 + $0xb0] sm:$0xff]
    %v82 = vld [vmem:[%s2 + $0xb8] sm:$0xff]
    %v83 = vld [vmem:[%s2 + $0xc0] sm:$0xff]
    %v84 = vld [vmem:[%s2 + $0xc8] sm:$0xff]
    %v85 = vld [vmem:[%s2 + $0xd0] sm:$0xff]
    %v86 = vld [vmem:[%s2 + $0xd8] sm:$0xff]
    %v87 = vld [vmem:[%s2 + $0xe0] sm:$0xff]
    %v88 = vld [vmem:[%s2 + $0xe8] sm:$0xff]
    %v89 = vld [vmem:[%s2 + $0xf0] sm:$0xff]
    %v90 = vld [vmem:[%s2 + $0xf8] sm:$0xff]
    %92 = vset.pattern.permute.xlu0 0
    %93 = vperm.xlu0 %92, %v59
    %v94 = vpop.permute.xlu0 %93
    %97 = vset.pattern.permute.xlu0 0
    %98 = vperm.xlu0 %97, %v60
    %v99 = vpop.permute.xlu0 %98
    %102 = vset.pattern.permute.xlu0 0
    %103 = vperm.xlu0 %102, %v61
    %v104 = vpop.permute.xlu0 %103
    %107 = vset.pattern.permute.xlu0 0
    %108 = vperm.xlu0 %107, %v62
    %v109 = vpop.permute.xlu0 %108
    %112 = vset.pattern.permute.xlu0 0
    %113 = vperm.xlu0 %112, %v63
    %v114 = vpop.permute.xlu0 %113
    %117 = vset.pattern.permute.xlu0 0
    %118 = vperm.xlu0 %117, %v64
    %v119 = vpop.permute.xlu0 %118
    %122 = vset.pattern.permute.xlu0 0
    %123 = vperm.xlu0 %122, %v65
    %v124 = vpop.permute.xlu0 %123
    %127 = vset.pattern.permute.xlu0 0
    %128 = vperm.xlu0 %127, %v66
    %v129 = vpop.permute.xlu0 %128
    %132 = vset.pattern.permute.xlu0 0
    %133 = vperm.xlu0 %132, %v67
    %v134 = vpop.permute.xlu0 %133
    %137 = vset.pattern.permute.xlu0 0
    %138 = vperm.xlu0 %137, %v68
    %v139 = vpop.permute.xlu0 %138
    %142 = vset.pattern.permute.xlu0 0
    %143 = vperm.xlu0 %142, %v69
    %v144 = vpop.permute.xlu0 %143
    %147 = vset.pattern.permute.xlu0 0
    %148 = vperm.xlu0 %147, %v70
    %v149 = vpop.permute.xlu0 %148
    %152 = vset.pattern.permute.xlu0 0
    %153 = vperm.xlu0 %152, %v71
    %v154 = vpop.permute.xlu0 %153
    %157 = vset.pattern.permute.xlu0 0
    %158 = vperm.xlu0 %157, %v72
    %v159 = vpop.permute.xlu0 %158
    %162 = vset.pattern.permute.xlu0 0
    %163 = vperm.xlu0 %162, %v73
    %v164 = vpop.permute.xlu0 %163
    %167 = vset.pattern.permute.xlu0 0
    %168 = vperm.xlu0 %167, %v74
    %v169 = vpop.permute.xlu0 %168
    %172 = vset.pattern.permute.xlu0 0
    %173 = vperm.xlu0 %172, %v75
    %v174 = vpop.permute.xlu0 %173
    %177 = vset.pattern.permute.xlu0 0
    %178 = vperm.xlu0 %177, %v76
    %v179 = vpop.permute.xlu0 %178
    %182 = vset.pattern.permute.xlu0 0
    %183 = vperm.xlu0 %182, %v77
    %v184 = vpop.permute.xlu0 %183
    %187 = vset.pattern.permute.xlu0 0
    %188 = vperm.xlu0 %187, %v78
    %v189 = vpop.permute.xlu0 %188
    %192 = vset.pattern.permute.xlu0 0
    %193 = vperm.xlu0 %192, %v79
    %v194 = vpop.permute.xlu0 %193
    %197 = vset.pattern.permute.xlu0 0
    %198 = vperm.xlu0 %197, %v80
    %v199 = vpop.permute.xlu0 %198
    %202 = vset.pattern.permute.xlu0 0
    %203 = vperm.xlu0 %202, %v81
    %v204 = vpop.permute.xlu0 %203
    %207 = vset.pattern.permute.xlu0 0
    %208 = vperm.xlu0 %207, %v82
    %v209 = vpop.permute.xlu0 %208
    %212 = vset.pattern.permute.xlu0 0
    %213 = vperm.xlu0 %212, %v83
    %v214 = vpop.permute.xlu0 %213
    %217 = vset.pattern.permute.xlu0 0
    %218 = vperm.xlu0 %217, %v84
    %v219 = vpop.permute.xlu0 %218
    %222 = vset.pattern.permute.xlu0 0
    %223 = vperm.xlu0 %222, %v85
    %v224 = vpop.permute.xlu0 %223
    %227 = vset.pattern.permute.xlu0 0
    %228 = vperm.xlu0 %227, %v86
    %v229 = vpop.permute.xlu0 %228
    %232 = vset.pattern.permute.xlu0 0
    %233 = vperm.xlu0 %232, %v87
    %v234 = vpop.permute.xlu0 %233
    %237 = vset.pattern.permute.xlu0 0
    %238 = vperm.xlu0 %237, %v88
    %v239 = vpop.permute.xlu0 %238
    %242 = vset.pattern.permute.xlu0 0
    %243 = vperm.xlu0 %242, %v89
    %v244 = vpop.permute.xlu0 %243
    %247 = vset.pattern.permute.xlu0 0
    %248 = vperm.xlu0 %247, %v90
    %v249 = vpop.permute.xlu0 %248
    %v283 = vunpack.c.l.b16 %v24
    %v284 = vunpack.c.l.b16 %v25
    %v285 = vunpack.c.l.b16 %v26
    %v286 = vunpack.c.l.b16 %v27
    %v287 = vunpack.c.l.b16 %v28
    %v288 = vunpack.c.l.b16 %v29
    %v289 = vunpack.c.l.b16 %v30
    %v290 = vunpack.c.l.b16 %v31
    %v291 = vunpack.c.l.b16 %v32
    %v292 = vunpack.c.l.b16 %v33
    %v293 = vunpack.c.l.b16 %v34
    %v294 = vunpack.c.l.b16 %v35
    %v295 = vunpack.c.l.b16 %v36
    %v296 = vunpack.c.l.b16 %v37
    %v297 = vunpack.c.l.b16 %v38
    %v298 = vunpack.c.l.b16 %v39
    %v299 = vunpack.c.l.b16 %v40
    %v300 = vunpack.c.l.b16 %v41
    %v301 = vunpack.c.l.b16 %v42
    %v302 = vunpack.c.l.b16 %v43
    %v303 = vunpack.c.l.b16 %v44
    %v304 = vunpack.c.l.b16 %v45
    %v305 = vunpack.c.l.b16 %v46
    %v306 = vunpack.c.l.b16 %v47
    %v307 = vunpack.c.l.b16 %v48
    %v308 = vunpack.c.l.b16 %v49
    %v309 = vunpack.c.l.b16 %v50
    %v310 = vunpack.c.l.b16 %v51
    %v311 = vunpack.c.l.b16 %v52
    %v312 = vunpack.c.l.b16 %v53
    %v313 = vunpack.c.l.b16 %v54
    %v314 = vunpack.c.l.b16 %v55
    %v315 = vpack.c.b16 %v284, %v283
    %v316 = vpack.c.b16 %v286, %v285
    %v317 = vpack.c.b16 %v288, %v287
    %v318 = vpack.c.b16 %v290, %v289
    %v319 = vpack.c.b16 %v292, %v291
    %v320 = vpack.c.b16 %v294, %v293
    %v321 = vpack.c.b16 %v296, %v295
    %v322 = vpack.c.b16 %v298, %v297
    %v323 = vpack.c.b16 %v300, %v299
    %v324 = vpack.c.b16 %v302, %v301
    %v325 = vpack.c.b16 %v304, %v303
    %v326 = vpack.c.b16 %v306, %v305
    %v327 = vpack.c.b16 %v308, %v307
    %v328 = vpack.c.b16 %v310, %v309
    %v329 = vpack.c.b16 %v312, %v311
    %v330 = vpack.c.b16 %v314, %v313
    %v334 = vunpack.c.l.b16 %v56
    %v335 = vunpack.c.l.b16 %v57
    %v336 = vunpack.c.l.b16 %v58
    %v337 = vpack.c.b16 %v335, %v334
    %v338 = vpack.c.b16 %v336, %v336
    %vm340 = vcmask 195584
    %v342 = vsel %vm340, %v315, 0
    %v345 = vsel %vm340, %v316, 0
    %v348 = vsel %vm340, %v317, 0
    %v351 = vsel %vm340, %v318, 0
    %v354 = vsel %vm340, %v319, 0
    %v357 = vsel %vm340, %v320, 0
    %v360 = vsel %vm340, %v321, 0
    %v363 = vsel %vm340, %v322, 0
    %v366 = vsel %vm340, %v323, 0
    %v369 = vsel %vm340, %v324, 0
    %v372 = vsel %vm340, %v325, 0
    %v375 = vsel %vm340, %v326, 0
    %v378 = vsel %vm340, %v327, 0
    %v381 = vsel %vm340, %v328, 0
    %v384 = vsel %vm340, %v329, 0
    %v387 = vsel %vm340, %v330, 0
    %vm389 = vcmask 1043456
    %v391 = vsel %vm389, %v338, 0
    %393 = vmatpush.bf16.msra.mxu0 0
    %394 = vmatpush.bf16.msra.mxu0 0
    %395 = vmatpush.bf16.msra.mxu0 0
    %396 = vmatpush.bf16.msra.mxu0 0
    %397 = vmatpush.bf16.msra.mxu0 0
    %398 = vmatpush.bf16.msra.mxu0 0
    %399 = vmatpush.bf16.msra.mxu0 %v391
    %400 = vmatpush.bf16.msra.mxu0 %v337
    %401 = vmatmul.bf16.gmra.mxu0 %v342
    %v402 = vpop.f32.mrf.mxu0
    %v403 = vadd.f32 %v94, %v402
    %v404 = vpop.f32.mrf.mxu0
    %v405 = vadd.f32 %v99, %v404
    %406 = vmatmul.bf16.gmra.mxu0 %v345
    %v407 = vpop.f32.mrf.mxu0
    %v408 = vadd.f32 %v104, %v407
    %v409 = vpop.f32.mrf.mxu0
    %v410 = vadd.f32 %v109, %v409
    %411 = vmatmul.bf16.gmra.mxu0 %v348
    %v412 = vpop.f32.mrf.mxu0
    %v413 = vadd.f32 %v114, %v412
    %v414 = vpop.f32.mrf.mxu0
    %v415 = vadd.f32 %v119, %v414
    %416 = vmatmul.bf16.gmra.mxu0 %v351
    %v417 = vpop.f32.mrf.mxu0
    %v418 = vadd.f32 %v124, %v417
    %v419 = vpop.f32.mrf.mxu0
    %v420 = vadd.f32 %v129, %v419
    %421 = vmatmul.bf16.gmra.mxu0 %v354
    %v422 = vpop.f32.mrf.mxu0
    %v423 = vadd.f32 %v134, %v422
    %v424 = vpop.f32.mrf.mxu0
    %v425 = vadd.f32 %v139, %v424
    %426 = vmatmul.bf16.gmra.mxu0 %v357
    %v427 = vpop.f32.mrf.mxu0
    %v428 = vadd.f32 %v144, %v427
    %v429 = vpop.f32.mrf.mxu0
    %v430 = vadd.f32 %v149, %v429
    %431 = vmatmul.bf16.gmra.mxu0 %v360
    %v432 = vpop.f32.mrf.mxu0
    %v433 = vadd.f32 %v154, %v432
    %v434 = vpop.f32.mrf.mxu0
    %v435 = vadd.f32 %v159, %v434
    %436 = vmatmul.bf16.gmra.mxu0 %v363
    %v437 = vpop.f32.mrf.mxu0
    %v438 = vadd.f32 %v164, %v437
    %v439 = vpop.f32.mrf.mxu0
    %v440 = vadd.f32 %v169, %v439
    %441 = vmatmul.bf16.gmra.mxu0 %v366
    %v442 = vpop.f32.mrf.mxu0
    %v443 = vadd.f32 %v174, %v442
    %v444 = vpop.f32.mrf.mxu0
    %v445 = vadd.f32 %v179, %v444
    %446 = vmatmul.bf16.gmra.mxu0 %v369
    %v447 = vpop.f32.mrf.mxu0
    %v448 = vadd.f32 %v184, %v447
    %v449 = vpop.f32.mrf.mxu0
    %v450 = vadd.f32 %v189, %v449
    %451 = vmatmul.bf16.gmra.mxu0 %v372
    %v452 = vpop.f32.mrf.mxu0
    %v453 = vadd.f32 %v194, %v452
    %v454 = vpop.f32.mrf.mxu0
    %v455 = vadd.f32 %v199, %v454
    %456 = vmatmul.bf16.gmra.mxu0 %v375
    %v457 = vpop.f32.mrf.mxu0
    %v458 = vadd.f32 %v204, %v457
    %v459 = vpop.f32.mrf.mxu0
    %v460 = vadd.f32 %v209, %v459
    %461 = vmatmul.bf16.gmra.mxu0 %v378
    %v462 = vpop.f32.mrf.mxu0
    %v463 = vadd.f32 %v214, %v462
    %v464 = vpop.f32.mrf.mxu0
    %v465 = vadd.f32 %v219, %v464
    %466 = vmatmul.bf16.gmra.mxu0 %v381
    %v467 = vpop.f32.mrf.mxu0
    %v468 = vadd.f32 %v224, %v467
    %v469 = vpop.f32.mrf.mxu0
    %v470 = vadd.f32 %v229, %v469
    %471 = vmatmul.bf16.gmra.mxu0 %v384
    %v472 = vpop.f32.mrf.mxu0
    %v473 = vadd.f32 %v234, %v472
    %v474 = vpop.f32.mrf.mxu0
    %v475 = vadd.f32 %v239, %v474
    %476 = vmatmul.bf16.gmra.mxu0 %v387
    %v477 = vpop.f32.mrf.mxu0
    %v478 = vadd.f32 %v244, %v477
    %v479 = vpop.f32.mrf.mxu0
    %v480 = vadd.f32 %v249, %v479
    %481 = vdwg.mxu0
    %v482 = vmax.f32 %v403, 0.0
    %v483 = vmax.f32 %v405, 0.0
    %v484 = vmax.f32 %v408, 0.0
    %v485 = vmax.f32 %v410, 0.0
    %v486 = vmax.f32 %v413, 0.0
    %v487 = vmax.f32 %v415, 0.0
    %v488 = vmax.f32 %v418, 0.0
    %v489 = vmax.f32 %v420, 0.0
    %v490 = vmax.f32 %v423, 0.0
    %v491 = vmax.f32 %v425, 0.0
    %v492 = vmax.f32 %v428, 0.0
    %v493 = vmax.f32 %v430, 0.0
    %v494 = vmax.f32 %v433, 0.0
    %v495 = vmax.f32 %v435, 0.0
    %v496 = vmax.f32 %v438, 0.0
    %v497 = vmax.f32 %v440, 0.0
    %v498 = vmax.f32 %v443, 0.0
    %v499 = vmax.f32 %v445, 0.0
    %v500 = vmax.f32 %v448, 0.0
    %v501 = vmax.f32 %v450, 0.0
    %v502 = vmax.f32 %v453, 0.0
    %v503 = vmax.f32 %v455, 0.0
    %v504 = vmax.f32 %v458, 0.0
    %v505 = vmax.f32 %v460, 0.0
    %v506 = vmax.f32 %v463, 0.0
    %v507 = vmax.f32 %v465, 0.0
    %v508 = vmax.f32 %v468, 0.0
    %v509 = vmax.f32 %v470, 0.0
    %v510 = vmax.f32 %v473, 0.0
    %v511 = vmax.f32 %v475, 0.0
    %v512 = vmax.f32 %v478, 0.0
    %v513 = vmax.f32 %v480, 0.0
    %v514 = vld [vmem:[%s3] sm:$0xff]
    %v515 = vld [vmem:[%s3 + $0x8] sm:$0xff]
    %v516 = vld [vmem:[%s3 + $0x10] sm:$0xff]
    %v517 = vld [vmem:[%s3 + $0x18] sm:$0xff]
    %v518 = vld [vmem:[%s3 + $0x20] sm:$0xff]
    %v519 = vld [vmem:[%s3 + $0x28] sm:$0xff]
    %v520 = vld [vmem:[%s3 + $0x30] sm:$0xff]
    %v521 = vld [vmem:[%s3 + $0x38] sm:$0xff]
    %v522 = vld [vmem:[%s3 + $0x40] sm:$0xff]
    %v523 = vld [vmem:[%s3 + $0x48] sm:$0xff]
    %v524 = vld [vmem:[%s3 + $0x50] sm:$0xff]
    %v525 = vld [vmem:[%s3 + $0x58] sm:$0xff]
    %v526 = vld [vmem:[%s3 + $0x60] sm:$0xff]
    %v527 = vld [vmem:[%s3 + $0x68] sm:$0xff]
    %v528 = vld [vmem:[%s3 + $0x70] sm:$0xff]
    %v529 = vld [vmem:[%s3 + $0x78] sm:$0xff]
    %v530 = vld [vmem:[#allocation2] sm:$0x1]
    %532 = vset.pattern.permute.xlu0 0
    %533 = vperm.xlu0 %532, %v514
    %v534 = vpop.permute.xlu0 %533
    %537 = vset.pattern.permute.xlu0 0
    %538 = vperm.xlu0 %537, %v515
    %v539 = vpop.permute.xlu0 %538
    %542 = vset.pattern.permute.xlu0 0
    %543 = vperm.xlu0 %542, %v516
    %v544 = vpop.permute.xlu0 %543
    %547 = vset.pattern.permute.xlu0 0
    %548 = vperm.xlu0 %547, %v517
    %v549 = vpop.permute.xlu0 %548
    %552 = vset.pattern.permute.xlu0 0
    %553 = vperm.xlu0 %552, %v518
    %v554 = vpop.permute.xlu0 %553
    %557 = vset.pattern.permute.xlu0 0
    %558 = vperm.xlu0 %557, %v519
    %v559 = vpop.permute.xlu0 %558
    %562 = vset.pattern.permute.xlu0 0
    %563 = vperm.xlu0 %562, %v520
    %v564 = vpop.permute.xlu0 %563
    %567 = vset.pattern.permute.xlu0 0
    %568 = vperm.xlu0 %567, %v521
    %v569 = vpop.permute.xlu0 %568
    %572 = vset.pattern.permute.xlu0 0
    %573 = vperm.xlu0 %572, %v522
    %v574 = vpop.permute.xlu0 %573
    %577 = vset.pattern.permute.xlu0 0
    %578 = vperm.xlu0 %577, %v523
    %v579 = vpop.permute.xlu0 %578
    %582 = vset.pattern.permute.xlu0 0
    %583 = vperm.xlu0 %582, %v524
    %v584 = vpop.permute.xlu0 %583
    %587 = vset.pattern.permute.xlu0 0
    %588 = vperm.xlu0 %587, %v525
    %v589 = vpop.permute.xlu0 %588
    %592 = vset.pattern.permute.xlu0 0
    %593 = vperm.xlu0 %592, %v526
    %v594 = vpop.permute.xlu0 %593
    %597 = vset.pattern.permute.xlu0 0
    %598 = vperm.xlu0 %597, %v527
    %v599 = vpop.permute.xlu0 %598
    %602 = vset.pattern.permute.xlu0 0
    %603 = vperm.xlu0 %602, %v528
    %v604 = vpop.permute.xlu0 %603
    %607 = vset.pattern.permute.xlu0 0
    %608 = vperm.xlu0 %607, %v529
    %v609 = vpop.permute.xlu0 %608
    %v611 = vmul.f32 %v482, %v534
    %v612 = vmul.f32 %v483, %v539
    %v613 = vmul.f32 %v484, %v544
    %v614 = vmul.f32 %v485, %v549
    %v615 = vmul.f32 %v486, %v554
    %v616 = vmul.f32 %v487, %v559
    %v617 = vmul.f32 %v488, %v564
    %v618 = vmul.f32 %v489, %v569
    %v619 = vmul.f32 %v490, %v574
    %v620 = vmul.f32 %v491, %v579
    %v621 = vmul.f32 %v492, %v584
    %v622 = vmul.f32 %v493, %v589
    %v623 = vmul.f32 %v494, %v594
    %v624 = vmul.f32 %v495, %v599
    %v625 = vmul.f32 %v496, %v604
    %v626 = vmul.f32 %v497, %v609
    %v627 = vadd.f32 %v611, %v612
    %v628 = vadd.f32 %v627, %v613
    %v629 = vadd.f32 %v628, %v614
    %v630 = vadd.f32 %v629, %v615
    %v631 = vadd.f32 %v630, %v616
    %v632 = vadd.f32 %v631, %v617
    %v633 = vadd.f32 %v632, %v618
    %v634 = vadd.f32 %v633, %v619
    %v635 = vadd.f32 %v634, %v620
    %v636 = vadd.f32 %v635, %v621
    %v637 = vadd.f32 %v636, %v622
    %v638 = vadd.f32 %v637, %v623
    %v639 = vadd.f32 %v638, %v624
    %v640 = vadd.f32 %v639, %v625
    %v641 = vadd.f32 %v640, %v626
    %v642 = vrot.slane %v641, 4
    %v643 = vadd.f32 %v641, %v642
    %v644 = vrot.slane %v643, 2
    %v645 = vadd.f32 %v643, %v644
    %v646 = vrot.slane %v645, 1
    %v647 = vadd.f32 %v645, %v646
    %v648 = vmul.f32 %v498, %v534
    %v649 = vmul.f32 %v499, %v539
    %v650 = vmul.f32 %v500, %v544
    %v651 = vmul.f32 %v501, %v549
    %v652 = vmul.f32 %v502, %v554
    %v653 = vmul.f32 %v503, %v559
    %v654 = vmul.f32 %v504, %v564
    %v655 = vmul.f32 %v505, %v569
    %v656 = vmul.f32 %v506, %v574
    %v657 = vmul.f32 %v507, %v579
    %v658 = vmul.f32 %v508, %v584
    %v659 = vmul.f32 %v509, %v589
    %v660 = vmul.f32 %v510, %v594
    %v661 = vmul.f32 %v511, %v599
    %v662 = vmul.f32 %v512, %v604
    %v663 = vmul.f32 %v513, %v609
    %v664 = vadd.f32 %v648, %v649
    %v665 = vadd.f32 %v664, %v650
    %v666 = vadd.f32 %v665, %v651
    %v667 = vadd.f32 %v666, %v652
    %v668 = vadd.f32 %v667, %v653
    %v669 = vadd.f32 %v668, %v654
    %v670 = vadd.f32 %v669, %v655
    %v671 = vadd.f32 %v670, %v656
    %v672 = vadd.f32 %v671, %v657
    %v673 = vadd.f32 %v672, %v658
    %v674 = vadd.f32 %v673, %v659
    %v675 = vadd.f32 %v674, %v660
    %v676 = vadd.f32 %v675, %v661
    %v677 = vadd.f32 %v676, %v662
    %v678 = vadd.f32 %v677, %v663
    %v679 = vrot.slane %v678, 4
    %v680 = vadd.f32 %v678, %v679
    %v681 = vrot.slane %v680, 2
    %v682 = vadd.f32 %v680, %v681
    %v683 = vrot.slane %v682, 1
    %v684 = vadd.f32 %v682, %v683
    %686 = vset.pattern.permute.xlu0 0
    %687 = vperm.xlu0 %686, %v530
    %v688 = vpop.permute.xlu0 %687
    %v690 = vperm.slane %v688, 0
    %v691 = vadd.f32 %v647, %v690
    %v692 = vxor.u32 %v691, 2147483648
    %v693 = vmul.f32 %v692, 1.442695
    %v694 = vpow.pop %v693
    %v695 = vadd.f32 %v694, 1.0
    %v696 = vrcp.pop %v695
    %v697 = vmul.f32 %v695, %v696
    %v698 = vsub.f32 1.0, %v697
    %v699 = vmul.f32 %v696, %v698
    %v700 = vadd.f32 %v696, %v699
    %vm701 = vweird.f32 %v695
    %vm702 = vweird.f32 %v696
    %vm703 = vmor %vm701, %vm702
    %v704 = vsel %vm703, %v696, %v700
    %v705 = vand.u32 2147483647, %v695
    %vm706 = vcmp.eq.f32.partialorder %v705, 8.507059e+37
    %v707 = vand.u32 %v695, 2147483648
    %v708 = vor.u32 1.1754944e-38, %v707
    %v709 = vsel %vm706, %v708, %v704
    %v710 = vmul.f32 1.0, %v709
    %711 = vst [vmem:[#allocation3] sm:$0x1] %v710
    %v712 = vadd.f32 %v684, %v690
    %v713 = vxor.u32 %v712, 2147483648
    %v714 = vmul.f32 %v713, 1.442695
    %v715 = vpow.pop %v714
    %v716 = vadd.f32 %v715, 1.0
    %v717 = vrcp.pop %v716
    %v718 = vmul.f32 %v716, %v717
    %v719 = vsub.f32 1.0, %v718
    %v720 = vmul.f32 %v717, %v719
    %v721 = vadd.f32 %v717, %v720
    %vm722 = vweird.f32 %v716
    %vm723 = vweird.f32 %v717
    %vm724 = vmor %vm722, %vm723
    %v725 = vsel %vm724, %v717, %v721
    %v726 = vand.u32 2147483647, %v716
    %vm727 = vcmp.eq.f32.partialorder %v726, 8.507059e+37
    %v728 = vand.u32 %v716, 2147483648
    %v729 = vor.u32 1.1754944e-38, %v728
    %v730 = vsel %vm727, %v729, %v725
    %v731 = vmul.f32 1.0, %v730
    %732 = vst [vmem:[#allocation3 + $0x1] sm:$0x1] %v731
    // Predicated region
    $region22: #{tpu_custom_call.1} parent=1 // pred_check
      _
    $region23: #{tpu_custom_call.1} parent=1 // pred_check_branch
      %734 = sbr.rel (0) target = $region25
    $region24: #{tpu_custom_call.1} parent=1 // pred_region
      %736 = vsyncadd [#allocation4], 0
      %s738 = sshll.u32 [#allocation3], 4
      %s739 = int_to_ptr.vmem [resolvable:$true] %s738
      %s740 = sshll.u32 %s5, 4
      %s741 = int_to_ptr.hbm [resolvable:$true] %s740
      %743 = dma.vmem_to_hbm [thread:$0]  %s739, 32, %s741, [#allocation4]
    $region25: #{tpu_custom_call.1} parent=1 // pred_fallthru
      _
    // Predicated region
    $region26: #{tpu_custom_call.1} parent=1 // pred_check
      _
    $region27: #{tpu_custom_call.1} parent=1 // pred_check_branch
      %745 = sbr.rel (0) target = $region29
    $region28: #{tpu_custom_call.1} parent=1 // pred_region
      %747 = dma.done [#allocation4], 32
    $region29: #{tpu_custom_call.1} parent=1 // pred_fallthru
      _
    %748 = vsyncpa [#allocation4], 1

</llo_original>
